<compile_context>
chip_gen: v7x
topology: tpu7x:2x2x1
jax: 0.10.0
libtpu: 0.0.40
codegen_flags: <defaults>
</compile_context>

<pallas_src>
import functools

import jax
import jax.numpy as jnp
from jax.experimental import pallas as pl
from jax.experimental.pallas import tpu as pltpu


# -----------------------------------------------------------------------------
# Fused kernel: 3x3 conv (pad=1) + bias + GroupNorm + SiLU for one batch image
# -----------------------------------------------------------------------------
def _conv_block_kernel(x_ref, w_ref, p_ref, g_ref, o_ref, *, H, W, inv_n, eps):
    """Block shapes seen by the kernel:
      x_ref: (1, Cin, H*W)   f32   flattened NCHW image for this batch element
      w_ref: (Cout, 9*Cin)   bf16  taps packed along K, tap index t = ky*3+kx
      p_ref: (3, Cout, 1)    f32   [bias, gamma, beta]
      g_ref: (Cout, Cout)    f32   block-diagonal same-group 0/1 mask
      o_ref: (1, Cout, H*W)  f32   lane-dense output slab
    """
    Cin = x_ref.shape[1]
    HW = H * W

    # bf16 MXU operand; cast once here (f32 accumulation in the dot below).
    x = x_ref[0].astype(jnp.bfloat16)                         # (Cin, HW)

    # Zero-extend the flat spatial axis so every +/-1 row/col tap shift is a
    # static in-bounds slice; out-of-image taps read the zero pad.
    P = W + 1
    zpad = jnp.zeros((Cin, P), jnp.bfloat16)
    xp = jnp.concatenate([zpad, x, zpad], axis=1)             # (Cin, HW + 2P)

    # Column-validity masks: a flat shift by dx = +/-1 must not wrap across
    # image rows; those positions correspond to the conv's zero padding.
    col = jax.lax.broadcasted_iota(jnp.int32, (Cin, HW), 1) % W
    ok_left = col > 0             # valid output positions for dx == -1
    ok_right = col < (W - 1)      # valid output positions for dx == +1

    # Build the (9*Cin, HW) im2col operand once (tap-major, cin-minor rows,
    # matching the packed weight layout).
    taps = []
    for dy in (-1, 0, 1):
        for dx in (-1, 0, 1):
            k = dy * W + dx
            v = xp[:, P + k:P + k + HW]                       # (Cin, HW)
            if dx == -1:
                v = jnp.where(ok_left, v, jnp.bfloat16(0))
            elif dx == 1:
                v = jnp.where(ok_right, v, jnp.bfloat16(0))
            taps.append(v)
    im2col = jnp.concatenate(taps, axis=0)                    # (9*Cin, HW) bf16

    # One MXU contraction: (Cout, 9*Cin) @ (9*Cin, HW) -> (Cout, HW), f32 acc.
    y = jnp.dot(w_ref[...], im2col, preferred_element_type=jnp.float32)
    y = y + p_ref[0]                                          # + bias (Cout, 1)

    # GroupNorm: per-(batch, group) mean/var; the block-diagonal group mask
    # sums the per-channel statistics within each group and broadcasts the
    # group value back to every channel of that group.
    gmask = g_ref[...]                                        # (Cout, Cout)
    s1 = jnp.sum(y, axis=1, keepdims=True)                    # (Cout, 1)
    mean_c = jnp.dot(gmask, s1, preferred_element_type=jnp.float32) * inv_n
    d = y - mean_c
    s2 = jnp.sum(d * d, axis=1, keepdims=True)                # (Cout, 1)
    var_c = jnp.dot(gmask, s2, preferred_element_type=jnp.float32) * inv_n

    z = d * jax.lax.rsqrt(var_c + eps) * p_ref[1] + p_ref[2]  # affine, f32
    o_ref[0] = z * jax.nn.sigmoid(z)                          # SiLU, lane-dense store


# -----------------------------------------------------------------------------
# One-time parameter repack (do this at init, not per forward call)
# -----------------------------------------------------------------------------
def prepare_conv_block_params(w, b, gamma, beta, groups):
    """w: (Cout, Cin, 3, 3), b/gamma/beta: (Cout,)  (PyTorch layouts)."""
    Cout, Cin, KH, KW = w.shape
    assert (KH, KW) == (3, 3) and Cout % groups == 0
    Cg = Cout // groups

    # (Cout, Cin, 3, 3) -> (Cout, 3, 3, Cin) -> (Cout, 9*Cin) bf16 MXU operand;
    # column index = (ky*3 + kx)*Cin + cin, matching the in-kernel im2col rows.
    w_r = (w.astype(jnp.float32).transpose(0, 2, 3, 1)
             .reshape(Cout, 9 * Cin).astype(jnp.bfloat16))

    affine = jnp.stack([b, gamma, beta]).astype(jnp.float32).reshape(3, Cout, 1)

    ch_group = jnp.arange(Cout) // Cg
    gmask = (ch_group[:, None] == ch_group[None, :]).astype(jnp.float32)

    return {"w": w_r, "affine": affine, "gmask": gmask}


# -----------------------------------------------------------------------------
# Forward wrapper (PyTorch-compatible NCHW in / NCHW out, no HBM layout passes)
# -----------------------------------------------------------------------------
def conv_block_forward(x, params, *, groups=8, eps=1e-5):
    """x: (B, Cin, H, W) f32 NCHW. Returns (B, Cout, H, W) f32."""
    B, Cin, H, W = x.shape
    Cout = params["w"].shape[0]
    Cg = Cout // groups
    HW = H * W

    x_flat = x.astype(jnp.float32).reshape(B, Cin, HW)   # free (metadata only)

    out = pl.pallas_call(
        functools.partial(_conv_block_kernel, H=H, W=W,
                          inv_n=1.0 / (Cg * HW), eps=eps),
        out_shape=jax.ShapeDtypeStruct((B, Cout, HW), jnp.float32),
        grid=(B,),
        in_specs=[
            pl.BlockSpec((1, Cin, HW), lambda bi: (bi, 0, 0)),
            pl.BlockSpec((Cout, 9 * Cin), lambda bi: (0, 0)),
            pl.BlockSpec((3, Cout, 1), lambda bi: (0, 0, 0)),
            pl.BlockSpec((Cout, Cout), lambda bi: (0, 0)),
        ],
        out_specs=pl.BlockSpec((1, Cout, HW), lambda bi: (bi, 0, 0)),
        compiler_params=pltpu.CompilerParams(
            dimension_semantics=("parallel",)),
    )(x_flat, params["w"], params["affine"], params["gmask"])

    return out.reshape(B, Cout, H, W)                    # free (metadata only)


# -----------------------------------------------------------------------------
# Pure-JAX reference (PyTorch ConvBlock semantics) for correctness check
# -----------------------------------------------------------------------------
def ref_conv_block(x, w, b, gamma, beta, groups=8, eps=1e-5):
    y = jax.lax.conv_general_dilated(
        x, w, window_strides=(1, 1), padding=((1, 1), (1, 1)),
        dimension_numbers=("NCHW", "OIHW", "NCHW"))
    y = y + b[None, :, None, None]
    B, C, H, W = y.shape
    yg = y.reshape(B, groups, -1)
    mu = jnp.mean(yg, axis=-1, keepdims=True)
    var = jnp.mean((yg - mu) ** 2, axis=-1, keepdims=True)
    yh = ((yg - mu) * jax.lax.rsqrt(var + eps)).reshape(B, C, H, W)
    z = yh * gamma[None, :, None, None] + beta[None, :, None, None]
    return z * jax.nn.sigmoid(z)


# -----------------------------------------------------------------------------
if __name__ == "__main__":
    key = jax.random.PRNGKey(0)
    kx, kw, kb, kg, kbt = jax.random.split(key, 5)

    B, Cin, H, W = 2, 4, 16, 16
    Cout, groups = 32, 8

    x = jax.random.normal(kx, (B, Cin, H, W), jnp.float32)
    w = 0.1 * jax.random.normal(kw, (Cout, Cin, 3, 3), jnp.float32)
    b = 0.1 * jax.random.normal(kb, (Cout,), jnp.float32)
    gamma = 1.0 + 0.1 * jax.random.normal(kg, (Cout,), jnp.float32)
    beta = 0.1 * jax.random.normal(kbt, (Cout,), jnp.float32)

    params = prepare_conv_block_params(w, b, gamma, beta, groups)
    out = conv_block_forward(x, params, groups=groups)
    out = jax.block_until_ready(out)

    assert out.shape == (B, Cout, H, W), out.shape
    assert bool(jnp.all(jnp.isfinite(out)))

    ref = ref_conv_block(x, w, b, gamma, beta, groups)
    max_err = float(jnp.max(jnp.abs(out - ref)))
    assert max_err < 3e-2, f"max abs err vs reference: {max_err}"

    print("KERNEL_OK")
</pallas_src>

<mosaic_0001>
module attributes {stable_mosaic.version = 11 : i64} {
  func.func @_conv_block_kernel(%arg0: i32, %arg1: memref<1x4x256xf32, #tpu.memory_space<vmem>>, %arg2: memref<32x36xbf16, #tpu.memory_space<vmem>>, %arg3: memref<3x32x1xf32, #tpu.memory_space<vmem>>, %arg4: memref<32x32xf32, #tpu.memory_space<vmem>>, %arg5: memref<1x32x256xf32, #tpu.memory_space<vmem>>) attributes {dimension_semantics = [#tpu.dimension_semantics<parallel>], iteration_bounds = array<i64: 2>, scalar_prefetch = 0 : i64, scratch_operands = 0 : i64, tpu.core_type = #tpu.core_type<tc>, window_params = [{transform_indices = @transform_0, window_bounds = array<i64: 1, 4, 256>}, {pipeline_mode = #tpu.pipeline_mode<synchronous>, transform_indices = @transform_1, window_bounds = array<i64: 32, 36>}, {pipeline_mode = #tpu.pipeline_mode<synchronous>, transform_indices = @transform_2, window_bounds = array<i64: 3, 32, 1>}, {pipeline_mode = #tpu.pipeline_mode<synchronous>, transform_indices = @transform_3, window_bounds = array<i64: 32, 32>}, {transform_indices = @transform_4, window_bounds = array<i64: 1, 32, 256>}]} {
    %c0 = arith.constant 0 : index
    %c0_0 = arith.constant 0 : index
    %c0_1 = arith.constant 0 : index
    %0 = vector.load %arg1[%c0, %c0_0, %c0_1] : memref<1x4x256xf32, #tpu.memory_space<vmem>>, vector<1x4x256xf32>
    %1 = vector.shape_cast %0 : vector<1x4x256xf32> to vector<4x256xf32>
    %2 = arith.truncf %1 : vector<4x256xf32> to vector<4x256xbf16>
    %cst = arith.constant 0.000000e+00 : bf16
    %3 = vector.broadcast %cst : bf16 to vector<4x17xbf16>
    %4 = tpu.concatenate %3, %2, %3 in 1 : vector<4x17xbf16>, vector<4x256xbf16>, vector<4x17xbf16> -> vector<4x290xbf16>
    %5 = tpu.iota {dimensions = array<i32: 1>} : vector<4x256xi32>
    %c16_i32 = arith.constant 16 : i32
    %c0_i32 = arith.constant 0 : i32
    %6 = arith.cmpi eq, %c16_i32, %c0_i32 : i32
    %c1_i32 = arith.constant 1 : i32
    %7 = arith.select %6, %c1_i32, %c16_i32 : i32
    %8 = vector.broadcast %7 : i32 to vector<4x256xi32>
    %9 = arith.remsi %5, %8 : vector<4x256xi32>
    %c0_i32_2 = arith.constant 0 : i32
    %10 = vector.broadcast %c0_i32_2 : i32 to vector<4x256xi32>
    %11 = arith.cmpi ne, %9, %10 : vector<4x256xi32>
    %c0_i32_3 = arith.constant 0 : i32
    %12 = vector.broadcast %c0_i32_3 : i32 to vector<4x256xi32>
    %13 = arith.cmpi slt, %9, %12 : vector<4x256xi32>
    %c0_i32_4 = arith.constant 0 : i32
    %14 = arith.cmpi slt, %7, %c0_i32_4 : i32
    %15 = vector.broadcast %14 : i1 to vector<4x256xi1>
    %16 = vector.broadcast %15 : vector<4x256xi1> to vector<4x256xi1>
    %17 = arith.xori %13, %16 : vector<4x256xi1>
    %18 = arith.andi %17, %11 : vector<4x256xi1>
    %19 = vector.broadcast %7 : i32 to vector<4x256xi32>
    %20 = arith.addi %9, %19 : vector<4x256xi32>
    %21 = arith.select %18, %20, %9 : vector<4x256xi1>, vector<4x256xi32>
    %c0_i32_5 = arith.constant 0 : i32
    %22 = vector.broadcast %c0_i32_5 : i32 to vector<4x256xi32>
    %23 = arith.cmpi sgt, %21, %22 : vector<4x256xi32>
    %c15_i32 = arith.constant 15 : i32
    %24 = vector.broadcast %c15_i32 : i32 to vector<4x256xi32>
    %25 = arith.cmpi slt, %21, %24 : vector<4x256xi32>
    %26 = vector.extract_strided_slice %4 {offsets = [0, 0], sizes = [4, 256], strides = [1, 1]} : vector<4x290xbf16> to vector<4x256xbf16>
    %cst_6 = arith.constant 0.000000e+00 : bf16
    %27 = vector.broadcast %cst_6 : bf16 to vector<4x256xbf16>
    %28 = arith.select %23, %26, %27 : vector<4x256xi1>, vector<4x256xbf16>
    %29 = vector.extract_strided_slice %4 {offsets = [0, 1], sizes = [4, 256], strides = [1, 1]} : vector<4x290xbf16> to vector<4x256xbf16>
    %30 = vector.extract_strided_slice %4 {offsets = [0, 2], sizes = [4, 256], strides = [1, 1]} : vector<4x290xbf16> to vector<4x256xbf16>
    %cst_7 = arith.constant 0.000000e+00 : bf16
    %31 = vector.broadcast %cst_7 : bf16 to vector<4x256xbf16>
    %32 = arith.select %25, %30, %31 : vector<4x256xi1>, vector<4x256xbf16>
    %33 = vector.extract_strided_slice %4 {offsets = [0, 16], sizes = [4, 256], strides = [1, 1]} : vector<4x290xbf16> to vector<4x256xbf16>
    %cst_8 = arith.constant 0.000000e+00 : bf16
    %34 = vector.broadcast %cst_8 : bf16 to vector<4x256xbf16>
    %35 = arith.select %23, %33, %34 : vector<4x256xi1>, vector<4x256xbf16>
    %36 = vector.extract_strided_slice %4 {offsets = [0, 17], sizes = [4, 256], strides = [1, 1]} : vector<4x290xbf16> to vector<4x256xbf16>
    %37 = vector.extract_strided_slice %4 {offsets = [0, 18], sizes = [4, 256], strides = [1, 1]} : vector<4x290xbf16> to vector<4x256xbf16>
    %cst_9 = arith.constant 0.000000e+00 : bf16
    %38 = vector.broadcast %cst_9 : bf16 to vector<4x256xbf16>
    %39 = arith.select %25, %37, %38 : vector<4x256xi1>, vector<4x256xbf16>
    %40 = vector.extract_strided_slice %4 {offsets = [0, 32], sizes = [4, 256], strides = [1, 1]} : vector<4x290xbf16> to vector<4x256xbf16>
    %cst_10 = arith.constant 0.000000e+00 : bf16
    %41 = vector.broadcast %cst_10 : bf16 to vector<4x256xbf16>
    %42 = arith.select %23, %40, %41 : vector<4x256xi1>, vector<4x256xbf16>
    %43 = vector.extract_strided_slice %4 {offsets = [0, 33], sizes = [4, 256], strides = [1, 1]} : vector<4x290xbf16> to vector<4x256xbf16>
    %44 = vector.extract_strided_slice %4 {offsets = [0, 34], sizes = [4, 256], strides = [1, 1]} : vector<4x290xbf16> to vector<4x256xbf16>
    %cst_11 = arith.constant 0.000000e+00 : bf16
    %45 = vector.broadcast %cst_11 : bf16 to vector<4x256xbf16>
    %46 = arith.select %25, %44, %45 : vector<4x256xi1>, vector<4x256xbf16>
    %47 = tpu.concatenate %28, %29, %32, %35, %36, %39, %42, %43, %46 in 0 : vector<4x256xbf16>, vector<4x256xbf16>, vector<4x256xbf16>, vector<4x256xbf16>, vector<4x256xbf16>, vector<4x256xbf16>, vector<4x256xbf16>, vector<4x256xbf16>, vector<4x256xbf16> -> vector<36x256xbf16>
    %c0_12 = arith.constant 0 : index
    %c0_13 = arith.constant 0 : index
    %48 = vector.load %arg2[%c0_12, %c0_13] : memref<32x36xbf16, #tpu.memory_space<vmem>>, vector<32x36xbf16>
    %cst_14 = arith.constant dense<0.000000e+00> : vector<32x256xf32>
    %49 = tpu.matmul %48, %47, %cst_14 {dimension_numbers = #tpu.dot_dimension_numbers<[1], [0], [0], [1], [0, 0, 1, 1], [], []>} : vector<32x36xbf16>, vector<36x256xbf16>, vector<32x256xf32> -> vector<32x256xf32>
    %c0_15 = arith.constant 0 : index
    %c0_16 = arith.constant 0 : index
    %c0_17 = arith.constant 0 : index
    %50 = vector.load %arg3[%c0_15, %c0_16, %c0_17] : memref<3x32x1xf32, #tpu.memory_space<vmem>>, vector<1x32x1xf32>
    %51 = vector.shape_cast %50 : vector<1x32x1xf32> to vector<32x1xf32>
    %52 = vector.broadcast %51 : vector<32x1xf32> to vector<32x256xf32>
    %53 = arith.addf %49, %52 : vector<32x256xf32>
    %c0_18 = arith.constant 0 : index
    %c0_19 = arith.constant 0 : index
    %54 = vector.load %arg4[%c0_18, %c0_19] : memref<32x32xf32, #tpu.memory_space<vmem>>, vector<32x32xf32>
    %cst_20 = arith.constant dense<0.000000e+00> : vector<32xf32>
    %55 = vector.multi_reduction <add>, %53, %cst_20 [1] : vector<32x256xf32> to vector<32xf32>
    %56 = vector.shape_cast %55 : vector<32xf32> to vector<32x1xf32>
    %cst_21 = arith.constant dense<0.000000e+00> : vector<32x1xf32>
    %57 = tpu.matmul %54, %56, %cst_21 {dimension_numbers = #tpu.dot_dimension_numbers<[1], [0], [0], [1], [0, 0, 1, 1], [], []>} : vector<32x32xf32>, vector<32x1xf32>, vector<32x1xf32> -> vector<32x1xf32>
    %cst_22 = arith.constant 9.765625E-4 : f32
    %58 = vector.broadcast %cst_22 : f32 to vector<32x1xf32>
    %59 = arith.mulf %57, %58 : vector<32x1xf32>
    %60 = vector.broadcast %59 : vector<32x1xf32> to vector<32x256xf32>
    %61 = arith.subf %53, %60 : vector<32x256xf32>
    %62 = arith.mulf %61, %61 : vector<32x256xf32>
    %cst_23 = arith.constant dense<0.000000e+00> : vector<32xf32>
    %63 = vector.multi_reduction <add>, %62, %cst_23 [1] : vector<32x256xf32> to vector<32xf32>
    %64 = vector.shape_cast %63 : vector<32xf32> to vector<32x1xf32>
    %cst_24 = arith.constant dense<0.000000e+00> : vector<32x1xf32>
    %65 = tpu.matmul %54, %64, %cst_24 {dimension_numbers = #tpu.dot_dimension_numbers<[1], [0], [0], [1], [0, 0, 1, 1], [], []>} : vector<32x32xf32>, vector<32x1xf32>, vector<32x1xf32> -> vector<32x1xf32>
    %cst_25 = arith.constant 9.765625E-4 : f32
    %66 = vector.broadcast %cst_25 : f32 to vector<32x1xf32>
    %67 = arith.mulf %65, %66 : vector<32x1xf32>
    %cst_26 = arith.constant 9.99999974E-6 : f32
    %68 = vector.broadcast %cst_26 : f32 to vector<32x1xf32>
    %69 = arith.addf %67, %68 : vector<32x1xf32>
    %70 = math.rsqrt %69 : vector<32x1xf32>
    %71 = vector.broadcast %70 : vector<32x1xf32> to vector<32x256xf32>
    %72 = arith.mulf %61, %71 : vector<32x256xf32>
    %c1 = arith.constant 1 : index
    %c0_27 = arith.constant 0 : index
    %c0_28 = arith.constant 0 : index
    %73 = vector.load %arg3[%c1, %c0_27, %c0_28] : memref<3x32x1xf32, #tpu.memory_space<vmem>>, vector<1x32x1xf32>
    %74 = vector.shape_cast %73 : vector<1x32x1xf32> to vector<32x1xf32>
    %75 = vector.broadcast %74 : vector<32x1xf32> to vector<32x256xf32>
    %76 = arith.mulf %72, %75 : vector<32x256xf32>
    %c2 = arith.constant 2 : index
    %c0_29 = arith.constant 0 : index
    %c0_30 = arith.constant 0 : index
    %77 = vector.load %arg3[%c2, %c0_29, %c0_30] : memref<3x32x1xf32, #tpu.memory_space<vmem>>, vector<1x32x1xf32>
    %78 = vector.shape_cast %77 : vector<1x32x1xf32> to vector<32x1xf32>
    %79 = vector.broadcast %78 : vector<32x1xf32> to vector<32x256xf32>
    %80 = arith.addf %76, %79 : vector<32x256xf32>
    %81 = arith.negf %80 : vector<32x256xf32>
    %82 = math.exp %81 : vector<32x256xf32>
    %cst_31 = arith.constant 1.000000e+00 : f32
    %83 = vector.broadcast %cst_31 : f32 to vector<32x256xf32>
    %84 = arith.addf %83, %82 : vector<32x256xf32>
    %85 = arith.divf %83, %84 : vector<32x256xf32>
    %86 = arith.mulf %80, %85 : vector<32x256xf32>
    %c0_32 = arith.constant 0 : index
    %c0_33 = arith.constant 0 : index
    %c0_34 = arith.constant 0 : index
    %87 = vector.load %arg5[%c0_32, %c0_33, %c0_34] : memref<1x32x256xf32, #tpu.memory_space<vmem>>, vector<1x32x256xf32>
    %88 = vector.shape_cast %87 : vector<1x32x256xf32> to vector<32x256xf32>
    %89 = vector.shape_cast %86 : vector<32x256xf32> to vector<1x32x256xf32>
    tpu.vector_store %arg5[%c0_32, %c0_33, %c0_34], %89 {strides = array<i32>} : memref<1x32x256xf32, #tpu.memory_space<vmem>>, vector<1x32x256xf32>,
    return
  }
  func.func @transform_0(%arg0: i32) -> (i32, i32, i32) {
    %c0_i32 = arith.constant 0 : i32
    %c0_i32_0 = arith.constant 0 : i32
    %c0_i32_1 = arith.constant 0 : i32
    return %arg0, %c0_i32, %c0_i32_0 : i32, i32, i32
  }
  func.func @transform_1(%arg0: i32) -> (i32, i32) {
    %c0_i32 = arith.constant 0 : i32
    %c0_i32_0 = arith.constant 0 : i32
    %c0_i32_1 = arith.constant 0 : i32
    return %c0_i32, %c0_i32_0 : i32, i32
  }
  func.func @transform_2(%arg0: i32) -> (i32, i32, i32) {
    %c0_i32 = arith.constant 0 : i32
    %c0_i32_0 = arith.constant 0 : i32
    %c0_i32_1 = arith.constant 0 : i32
    %c0_i32_2 = arith.constant 0 : i32
    return %c0_i32, %c0_i32_0, %c0_i32_1 : i32, i32, i32
  }
  func.func @transform_3(%arg0: i32) -> (i32, i32) {
    %c0_i32 = arith.constant 0 : i32
    %c0_i32_0 = arith.constant 0 : i32
    %c0_i32_1 = arith.constant 0 : i32
    return %c0_i32, %c0_i32_0 : i32, i32
  }
  func.func @transform_4(%arg0: i32) -> (i32, i32, i32) {
    %c0_i32 = arith.constant 0 : i32
    %c0_i32_0 = arith.constant 0 : i32
    %c0_i32_1 = arith.constant 0 : i32
    return %arg0, %c0_i32, %c0_i32_0 : i32, i32, i32
  }
}

</mosaic_0001>

<llo_original>
// kernel: tpu_custom_call.1
$region0: #{tpu_custom_call.1}
  #allocation0 [shape = 'u32[]', space=smem, size = 0x4, offset = 0x4, fixed_abs, tag = 'smem constant byte address 0x4 - core index']
  #allocation1 [shape = 'u32[144,128]{1,0:T(1,128)}', space=vmem, size = 0x12000, scoped, tag = 'internal scratch']
  %s0 = inlined_call_operand.vmem [shape: f32[2,4,256], index: 0, kind: input, shape index: {}]
  %s1 = inlined_call_operand.vmem [shape: bf16[32,36], index: 1, kind: input, shape index: {}]
  %s2 = inlined_call_operand.vmem [shape: f32[3,32,1], index: 2, kind: input, shape index: {}]
  %s3 = inlined_call_operand.vmem [shape: f32[32,32], index: 3, kind: input, shape index: {}]
  %s4 = inlined_call_operand.hbm [shape: f32[2,32,256], index: 4, kind: output, shape index: {}]
  %s5 = sld [smem:[#allocation0]]
  $region49: #{tpu_custom_call.1} parent=0
    _
  %s7 = ssub.s32 1, %s5
  %s8 = scalar_select 0, %s7, %s5
  $region1: #{tpu_custom_call.1} parent=0
    #allocation2 [shape = 'u8[65536]{0}', space=vmem, size = 0x10000, scoped, tag = 'output window, operand 0']
    #allocation3 [shape = 's32[2]{0}', space=sflag, size = 0x8, scoped, tag = 'scoped memory for tpu_custom_call.1']
    %9 = vsyncpa [#allocation3], 0
    %s10 = scalar_lea.sflag [#allocation3], 1
    %11 = vsyncpa %s10, 0
    loop: start=0, step=1, limit=4
    $region2: #{tpu_custom_call.1} parent=1 // loop_pre_header
      _
    $region3: #{tpu_custom_call.1} parent=1 // loop_header
      %s13 = sphi 0, %s17
      %p14 = scmp.ge.s32.totalorder %s13, 4
      %s23 = sphi 0, %s25
      %s26 = sphi 0, %s23
      %s27 = sphi 0, %s26
      %s43 = sphi 0, %s27
      %s47 = sphi 0, %s47
      %s49 = sphi 0, %s47
      %s50 = sphi 0, %s49
      %s64 = sphi 0, %s50
      %s68 = sphi 0, %s68
      %s70 = sphi 0, %s68
      %s71 = sphi 0, %s70
      %s85 = sphi 0, %s71
      %s89 = sphi 0, %s89
      %s91 = sphi 0, %s89
      %s92 = sphi 0, %s91
      %s106 = sphi 0, %s92
      %s112 = sphi 0, %s114
      %s115 = sphi 0, %s112
      %s116 = sphi 0, %s115
      %s132 = sphi 0, %s116
    $region4: #{tpu_custom_call.1} parent=1 // loop_header_branch
      %16 = sbr.rel (%p14) target = $region8
    $region5: #{tpu_custom_call.1} parent=1 // loop_body
      %s18 = ssub.s32 %s13, 1
      %s19 = ssub.s32 %s13, 2
      %s20 = sadd.s32 %s13, 1
      %s21 = ssub.s32 %s13, %s20
      %p22 = scmp.eq.s32.totalorder %s21, 0
      %s24 = sadd.s32 %s23, 1
      %s25 = scalar_select %p22, %s23, %s24
      %p28 = pneg %p22
      %p29 = scmp.eq.s32.totalorder %s13, 1
      %p30 = por %p28, %p29
      %p31 = scmp.ne.s32.totalorder %s23, %s26
      %p32 = scmp.eq.s32.totalorder %s13, 0
      %p33 = por %p31, %p32
      %p34 = scmp.ne.s32.totalorder %s23, %s26
      %p35 = scmp.eq.s32.totalorder %s18, 1
      %p36 = por %p34, %p35
      %p37 = scmp.ne.s32.totalorder %s26, %s27
      %p38 = scmp.eq.s32.totalorder %s18, 0
      %p39 = por %p37, %p38
      %p40 = scmp.ne.s32.totalorder %s26, %s27
      %p41 = scmp.eq.s32.totalorder %s19, 1
      %p42 = por %p40, %p41
      %p44 = scmp.ne.s32.totalorder %s27, %s43
      %p45 = scmp.eq.s32.totalorder %s19, 0
      %p46 = por %p44, %p45
      %s48 = sadd.s32 %s47, 1
      %p51 = scmp.eq.s32.totalorder %s13, 1
      %p52 = scmp.ne.s32.totalorder %s47, %s49
      %p53 = scmp.eq.s32.totalorder %s13, 0
      %p54 = por %p52, %p53
      %p55 = scmp.ne.s32.totalorder %s47, %s49
      %p56 = scmp.eq.s32.totalorder %s18, 1
      %p57 = por %p55, %p56
      %p58 = scmp.ne.s32.totalorder %s49, %s50
      %p59 = scmp.eq.s32.totalorder %s18, 0
      %p60 = por %p58, %p59
      %p61 = scmp.ne.s32.totalorder %s49, %s50
      %p62 = scmp.eq.s32.totalorder %s19, 1
      %p63 = por %p61, %p62
      %p65 = scmp.ne.s32.totalorder %s50, %s64
      %p66 = scmp.eq.s32.totalorder %s19, 0
      %p67 = por %p65, %p66
      %s69 = sadd.s32 %s68, 1
      %p72 = scmp.eq.s32.totalorder %s13, 1
      %p73 = scmp.ne.s32.totalorder %s68, %s70
      %p74 = scmp.eq.s32.totalorder %s13, 0
      %p75 = por %p73, %p74
      %p76 = scmp.ne.s32.totalorder %s68, %s70
      %p77 = scmp.eq.s32.totalorder %s18, 1
      %p78 = por %p76, %p77
      %p79 = scmp.ne.s32.totalorder %s70, %s71
      %p80 = scmp.eq.s32.totalorder %s18, 0
      %p81 = por %p79, %p80
      %p82 = scmp.ne.s32.totalorder %s70, %s71
      %p83 = scmp.eq.s32.totalorder %s19, 1
      %p84 = por %p82, %p83
      %p86 = scmp.ne.s32.totalorder %s71, %s85
      %p87 = scmp.eq.s32.totalorder %s19, 0
      %p88 = por %p86, %p87
      %s90 = sadd.s32 %s89, 1
      %p93 = scmp.eq.s32.totalorder %s13, 1
      %p94 = scmp.ne.s32.totalorder %s89, %s91
      %p95 = scmp.eq.s32.totalorder %s13, 0
      %p96 = por %p94, %p95
      %p97 = scmp.ne.s32.totalorder %s89, %s91
      %p98 = scmp.eq.s32.totalorder %s18, 1
      %p99 = por %p97, %p98
      %p100 = scmp.ne.s32.totalorder %s91, %s92
      %p101 = scmp.eq.s32.totalorder %s18, 0
      %p102 = por %p100, %p101
      %p103 = scmp.ne.s32.totalorder %s91, %s92
      %p104 = scmp.eq.s32.totalorder %s19, 1
      %p105 = por %p103, %p104
      %p107 = scmp.ne.s32.totalorder %s92, %s106
      %p108 = scmp.eq.s32.totalorder %s19, 0
      %p109 = por %p107, %p108
      %s110 = ssub.s32 %s13, %s20
      %p111 = scmp.eq.s32.totalorder %s110, 0
      %s113 = sadd.s32 %s112, 1
      %s114 = scalar_select %p111, %s112, %s113
      %p117 = pneg %p111
      %p118 = scmp.eq.s32.totalorder %s13, 1
      %p119 = por %p117, %p118
      %p120 = scmp.ne.s32.totalorder %s112, %s115
      %p121 = scmp.eq.s32.totalorder %s13, 0
      %p122 = por %p120, %p121
      %p123 = scmp.ne.s32.totalorder %s112, %s115
      %p124 = scmp.eq.s32.totalorder %s18, 1
      %p125 = por %p123, %p124
      %p126 = scmp.ne.s32.totalorder %s115, %s116
      %p127 = scmp.eq.s32.totalorder %s18, 0
      %p128 = por %p126, %p127
      %p129 = scmp.ne.s32.totalorder %s115, %s116
      %p130 = scmp.eq.s32.totalorder %s19, 1
      %p131 = por %p129, %p130
      %p133 = scmp.ne.s32.totalorder %s116, %s132
      %p134 = scmp.eq.s32.totalorder %s19, 0
      %p135 = por %p133, %p134
      %p136 = scmp.le.s32.totalorder 1, %s13
      %p137 = scmp.lt.s32.totalorder %s13, 3
      %p138 = pnand %p136, %p137
      %p139 = pneg %p138
      // Predicated region
      $region9: #{tpu_custom_call.1} parent=5 // pred_check
        _
      $region10: #{tpu_custom_call.1} parent=5 // pred_check_branch
        %141 = sbr.rel (%p138) target = $region12
      $region11: #{tpu_custom_call.1} parent=5 // pred_region
        %s142 = ssub.s32 %s13, 1
        // Predicated region
        $region13: #{tpu_custom_call.1} parent=11 // pred_check
          %p143 = pneg %p60
        $region14: #{tpu_custom_call.1} parent=11 // pred_check_branch
          %145 = sbr.rel (%p143) target = $region16
        $region15: #{tpu_custom_call.1} parent=11 // pred_region
          _
        $region16: #{tpu_custom_call.1} parent=11 // pred_fallthru
          _
        // Predicated region
        $region17: #{tpu_custom_call.1} parent=11 // pred_check
          %p146 = pneg %p81
        $region18: #{tpu_custom_call.1} parent=11 // pred_check_branch
          %148 = sbr.rel (%p146) target = $region20
        $region19: #{tpu_custom_call.1} parent=11 // pred_region
          _
        $region20: #{tpu_custom_call.1} parent=11 // pred_fallthru
          _
        // Predicated region
        $region21: #{tpu_custom_call.1} parent=11 // pred_check
          %p149 = pneg %p102
        $region22: #{tpu_custom_call.1} parent=11 // pred_check_branch
          %151 = sbr.rel (%p149) target = $region24
        $region23: #{tpu_custom_call.1} parent=11 // pred_region
          _
        $region24: #{tpu_custom_call.1} parent=11 // pred_fallthru
          _
      $region12: #{tpu_custom_call.1} parent=5 // pred_fallthru
        _
      %p152 = scmp.lt.s32.totalorder %s13, 2
      // Predicated region
      $region25: #{tpu_custom_call.1} parent=5 // pred_check
        %p153 = pneg %p152
      $region26: #{tpu_custom_call.1} parent=5 // pred_check_branch
        %155 = sbr.rel (%p153) target = $region28
      $region27: #{tpu_custom_call.1} parent=5 // pred_region
        // Predicated region
        $region29: #{tpu_custom_call.1} parent=27 // pred_check
          %p156 = pneg %p33
        $region30: #{tpu_custom_call.1} parent=27 // pred_check_branch
          %158 = sbr.rel (%p156) target = $region32
        $region31: #{tpu_custom_call.1} parent=27 // pred_region
          %p159 = scmp.lt.s32.totalorder %s13, 1
          %s160 = scalar_select %p159, %s13, 1
          %s161 = smul.addr %s160, 2
          %s162 = smul.addr %s161, 4
          %s163 = scalar_lea.vmem %s0, %s162
        $region32: #{tpu_custom_call.1} parent=27 // pred_fallthru
          _
      $region28: #{tpu_custom_call.1} parent=5 // pred_fallthru
        _
      %p164 = scmp.le.s32.totalorder 1, %s13
      %p165 = scmp.lt.s32.totalorder %s13, 3
      %p166 = pnand %p164, %p165
      %p167 = pneg %p166
      // Predicated region
      $region33: #{tpu_custom_call.1} parent=5 // pred_check
        _
      $region34: #{tpu_custom_call.1} parent=5 // pred_check_branch
        %169 = sbr.rel (%p166) target = $region36
      $region35: #{tpu_custom_call.1} parent=5 // pred_region
        %s170 = ssub.s32 %s13, 1
        %p171 = scmp.lt.s32.totalorder %s18, 1
        %s172 = scalar_select %p171, %s18, 1
        %s173 = smul.addr %s172, 2
        %s174 = smul.addr %s173, 4
        %s175 = scalar_lea.vmem %s0, %s174
        %p176 = pneg %p39
        %p177 = pneg %p36
        %p178 = pneg %p60
        %p179 = pneg %p57
        %p180 = pneg %p81
        %p181 = pneg %p78
        %p182 = pneg %p102
        %p183 = pneg %p99
        %p184 = pneg %p128
        %p185 = pneg %p125
        %s186 = sand.u32 %s115, 1
        %s187 = scalar_lea.sflag [#allocation3], %s186
        %s188 = sand.u32 %s115, 1
        %s189 = smul.addr %s188, 64
        %s190 = scalar_lea.vmem [#allocation2], %s189
        %p191 = scmp.lt.s32.totalorder %s18, 1
        %s192 = scalar_select %p191, %s18, 1
        %s193 = smul.addr %s192, 2
        %s194 = smul.addr %s193, 4
        %s195 = scalar_lea.vmem %s0, %s194
        %v199 = vld [vmem:[%s195] sm:$0xff]
        %v201 = vcombine.high %v199, %v199
        %v203 = vpack.c.bf16 %v199, %v199
        %v204 = vpack.c.bf16 %v201, %v201
        %207 = vrot.lane.b32.xlu0 %v203, 17
        %v208 = vpop.permute.xlu0 %207
        %209 = vrot.lane.b32.xlu0 %v204, 17
        %v210 = vpop.permute.xlu0 %209
        %vm211 = vcmask 138240
        %v212 = vsel %vm211, %v208, %v210
        %vm214 = vcmask 138240
        %v217 = vsel %vm214, 0, %v208
        %v220 = vsel %vm214, %v210, 0
        %v222 = vlaneseq
        %v223 = vand.u32 %v222, 127
        %v224 = vadd.s32 %v223, 128
        %vm225 = vcmp.lt.s32.totalorder %v223, 0
        %v226 = vsub.s32 0, %v223
        %v227 = vsel %vm225, %v226, %v223
        %v228 = vshrl.u32 %v227, 4
        %v229 = vand.u32 %v227, 15
        %v230 = vsub.s32 0, %v229
        %v231 = vsel %vm225, %v230, %v229
        %vm232 = vcmp.lt.s32.totalorder %v224, 0
        %v233 = vsub.s32 0, %v224
        %v234 = vsel %vm232, %v233, %v224
        %v235 = vshrl.u32 %v234, 4
        %v236 = vand.u32 %v234, 15
        %v237 = vsub.s32 0, %v236
        %v238 = vsel %vm232, %v237, %v236
        %vm239 = vcmp.ne.s32.totalorder %v231, 0
        %vm240 = vcmp.ne.s32.totalorder %v238, 0
        %vm241 = vcmp.lt.s32.totalorder %v231, 0
        %vm242 = vcmp.lt.s32.totalorder %v238, 0
        %vm243 = vmand %vm241, %vm239
        %vm244 = vmand %vm242, %vm240
        %v245 = vadd.s32 %v231, 16
        %v246 = vadd.s32 %v238, 16
        %v247 = vsel %vm243, %v245, %v231
        %v248 = vsel %vm244, %v246, %v238
        %vm249 = vcmp.gt.s32.totalorder %v247, 0
        %vm250 = vcmp.gt.s32.totalorder %v248, 0
        %vm251 = vcmp.lt.s32.totalorder %v247, 15
        %vm252 = vcmp.lt.s32.totalorder %v248, 15
        %vm253 = vmpackc.low %vm250, %vm249
        %v254 = vsel %vm253, 65537, 0
        %v255 = vlaneseq
        %v256 = vshrl.u32 %v255, 7
        %v257 = vsub.s32 0, %v256
        %v258 = vrot.slane %v254, %v257
        %v259 = vlaneseq
        %v260 = vshrl.u32 %v259, 7
        %v261 = vsub.s32 4, %v260
        %v262 = vrot.slane %v254, %v261
        %vm263 = vcmp.ne.s16.totalorder %v258, 0
        %vm264 = vcmp.ne.s16.totalorder %v262, 0
        %v265 = vsel %vm263, %v217, 0
        %v266 = vsel %vm264, %v212, 0
        %vm267 = vmpackc.low %vm252, %vm251
        %v268 = vsel %vm267, 65537, 0
        %v269 = vlaneseq
        %v270 = vshrl.u32 %v269, 7
        %v271 = vsub.s32 0, %v270
        %v272 = vrot.slane %v268, %v271
        %v273 = vlaneseq
        %v274 = vshrl.u32 %v273, 7
        %v275 = vsub.s32 4, %v274
        %v276 = vrot.slane %v268, %v275
        %277 = vrot.lane.b32.xlu0 %v272, 2
        %v278 = vpop.permute.xlu0 %277
        %279 = vrot.lane.b32.xlu0 %v276, 2
        %v280 = vpop.permute.xlu0 %279
        %vm281 = vcmask 15360
        %v282 = vsel %vm281, %v278, %v280
        %vm283 = vcmp.ne.s16.totalorder %v278, 0
        %vm284 = vcmp.ne.s16.totalorder %v282, 0
        %vm285 = vcmp.ne.s16.totalorder %v280, 0
        %v286 = vsel %vm283, %v217, 0
        %v287 = vsel %vm284, %v212, 0
        %v288 = vsel %vm285, %v220, 0
        %289 = vrot.lane.b32.xlu0 %v258, 16
        %v290 = vpop.permute.xlu0 %289
        %291 = vrot.lane.b32.xlu0 %v262, 16
        %v292 = vpop.permute.xlu0 %291
        %vm293 = vcmask 130048
        %v294 = vsel %vm293, %v290, %v292
        %vm295 = vcmp.ne.s16.totalorder %v290, 0
        %vm296 = vcmp.ne.s16.totalorder %v294, 0
        %vm297 = vcmp.ne.s16.totalorder %v292, 0
        %v298 = vsel %vm295, %v217, 0
        %v299 = vsel %vm296, %v212, 0
        %v300 = vsel %vm297, %v220, 0
        %301 = vrot.lane.b32.xlu0 %v272, 18
        %v302 = vpop.permute.xlu0 %301
        %303 = vrot.lane.b32.xlu0 %v276, 18
        %v304 = vpop.permute.xlu0 %303
        %vm305 = vcmask 146432
        %v306 = vsel %vm305, %v302, %v304
        %vm307 = vcmp.ne.s16.totalorder %v302, 0
        %vm308 = vcmp.ne.s16.totalorder %v306, 0
        %vm309 = vcmp.ne.s16.totalorder %v304, 0
        %v310 = vsel %vm307, %v217, 0
        %v311 = vsel %vm308, %v212, 0
        %v312 = vsel %vm309, %v220, 0
        %313 = vrot.lane.b32.xlu0 %v258, 32
        %v314 = vpop.permute.xlu0 %313
        %315 = vrot.lane.b32.xlu0 %v262, 32
        %v316 = vpop.permute.xlu0 %315
        %vm317 = vcmask 261120
        %v318 = vsel %vm317, %v314, %v316
        %vm319 = vcmp.ne.s16.totalorder %v314, 0
        %vm320 = vcmp.ne.s16.totalorder %v318, 0
        %vm321 = vcmp.ne.s16.totalorder %v316, 0
        %v322 = vsel %vm319, %v217, 0
        %v323 = vsel %vm320, %v212, 0
        %v324 = vsel %vm321, %v220, 0
        %325 = vrot.lane.b32.xlu0 %v272, 34
        %v326 = vpop.permute.xlu0 %325
        %327 = vrot.lane.b32.xlu0 %v276, 34
        %v328 = vpop.permute.xlu0 %327
        %vm329 = vcmask 277504
        %v330 = vsel %vm329, %v326, %v328
        %vm331 = vcmp.ne.s16.totalorder %v326, 0
        %vm332 = vcmp.ne.s16.totalorder %v330, 0
        %vm333 = vcmp.ne.s16.totalorder %v328, 0
        %v334 = vsel %vm331, %v217, 0
        %v335 = vsel %vm332, %v212, 0
        %v336 = vsel %vm333, %v220, 0
        %v339 = vrot.slane %v217, 6
        %v340 = vrot.slane %v212, 6
        %v341 = vrot.slane %v220, 6
        %342 = vrot.lane.b32.xlu0 %v339, 127
        %v343 = vpop.permute.xlu0 %342
        %344 = vrot.lane.b32.xlu0 %v340, 127
        %v345 = vpop.permute.xlu0 %344
        %346 = vrot.lane.b32.xlu0 %v341, 127
        %v347 = vpop.permute.xlu0 %346
        %vm348 = vcmask 1039360
        %v349 = vsel %vm348, %v343, %v345
        %v350 = vsel %vm348, %v345, %v347
        %v354 = vrot.slane %v286, 4
        %v355 = vrot.slane %v287, 4
        %v356 = vrot.slane %v288, 4
        %357 = vrot.lane.b32.xlu0 %v354, 126
        %v358 = vpop.permute.xlu0 %357
        %359 = vrot.lane.b32.xlu0 %v355, 126
        %v360 = vpop.permute.xlu0 %359
        %361 = vrot.lane.b32.xlu0 %v356, 126
        %v362 = vpop.permute.xlu0 %361
        %vm363 = vcmask 1031168
        %v364 = vsel %vm363, %v358, %v360
        %v365 = vsel %vm363, %v360, %v362
        %v369 = vrot.slane %v298, 2
        %v370 = vrot.slane %v299, 2
        %v371 = vrot.slane %v300, 2
        %372 = vrot.lane.b32.xlu0 %v369, 112
        %v373 = vpop.permute.xlu0 %372
        %374 = vrot.lane.b32.xlu0 %v370, 112
        %v375 = vpop.permute.xlu0 %374
        %376 = vrot.lane.b32.xlu0 %v371, 112
        %v377 = vpop.permute.xlu0 %376
        %vm378 = vcmask 916480
        %v379 = vsel %vm378, %v373, %v375
        %v380 = vsel %vm378, %v375, %v377
        %381 = vrot.lane.b32.xlu0 %v217, 111
        %v382 = vpop.permute.xlu0 %381
        %383 = vrot.lane.b32.xlu0 %v212, 111
        %v384 = vpop.permute.xlu0 %383
        %385 = vrot.lane.b32.xlu0 %v220, 111
        %v386 = vpop.permute.xlu0 %385
        %vm387 = vcmask 908288
        %v388 = vsel %vm387, %v382, %v384
        %v389 = vsel %vm387, %v384, %v386
        %v393 = vrot.slane %v310, 6
        %v394 = vrot.slane %v311, 6
        %v395 = vrot.slane %v312, 6
        %396 = vrot.lane.b32.xlu0 %v393, 110
        %v397 = vpop.permute.xlu0 %396
        %398 = vrot.lane.b32.xlu0 %v394, 110
        %v399 = vpop.permute.xlu0 %398
        %400 = vrot.lane.b32.xlu0 %v395, 110
        %v401 = vpop.permute.xlu0 %400
        %vm402 = vcmask 900096
        %v403 = vsel %vm402, %v397, %v399
        %v404 = vsel %vm402, %v399, %v401
        %v408 = vrot.slane %v322, 4
        %v409 = vrot.slane %v323, 4
        %v410 = vrot.slane %v324, 4
        %411 = vrot.lane.b32.xlu0 %v408, 96
        %v412 = vpop.permute.xlu0 %411
        %413 = vrot.lane.b32.xlu0 %v409, 96
        %v414 = vpop.permute.xlu0 %413
        %415 = vrot.lane.b32.xlu0 %v410, 96
        %v416 = vpop.permute.xlu0 %415
        %vm417 = vcmask 785408
        %v418 = vsel %vm417, %v412, %v414
        %v419 = vsel %vm417, %v414, %v416
        %v420 = vrot.slane %v217, 2
        %v421 = vrot.slane %v212, 2
        %v422 = vrot.slane %v220, 2
        %423 = vrot.lane.b32.xlu0 %v420, 95
        %v424 = vpop.permute.xlu0 %423
        %425 = vrot.lane.b32.xlu0 %v421, 95
        %v426 = vpop.permute.xlu0 %425
        %427 = vrot.lane.b32.xlu0 %v422, 95
        %v428 = vpop.permute.xlu0 %427
        %vm429 = vcmask 777216
        %v430 = vsel %vm429, %v424, %v426
        %v431 = vsel %vm429, %v426, %v428
        %435 = vrot.lane.b32.xlu0 %v334, 94
        %v436 = vpop.permute.xlu0 %435
        %437 = vrot.lane.b32.xlu0 %v335, 94
        %v438 = vpop.permute.xlu0 %437
        %439 = vrot.lane.b32.xlu0 %v336, 94
        %v440 = vpop.permute.xlu0 %439
        %vm441 = vcmask 769024
        %v442 = vsel %vm441, %v436, %v438
        %v443 = vsel %vm441, %v438, %v440
        %vm444 = vcmask 1041408
        %v447 = vsel %vm444, %v265, %v349
        %v450 = vsel %vm444, %v266, %v350
        %vm451 = vcmask 1043456
        %v453 = vsel %vm451, %v447, %v364
        %v455 = vsel %vm451, %v450, %v365
        %vm456 = vcmask 1045504
        %v458 = vsel %vm456, %v453, %v379
        %v461 = vsel %vm456, %v455, %v380
        %v465 = vsel %vm444, %v388, %v403
        %v468 = vsel %vm444, %v389, %v404
        %v470 = vsel %vm451, %v465, %v418
        %v472 = vsel %vm451, %v468, %v419
        %v474 = vsel %vm456, %v470, %v430
        %v477 = vsel %vm456, %v472, %v431
        %v479 = vld [vmem:[%s1] sm:$0xf]
        %v480 = vld [vmem:[%s1 + $0x4] sm:$0xf]
        %v481 = vld [vmem:[%s1 + $0x8] sm:$0xf]
        %v482 = vld [vmem:[%s1 + $0xc] sm:$0xf]
        %v483 = vld [vmem:[%s2] sm:$0xff]
        %v484 = vld [vmem:[%s2 + $0x8] sm:$0xff]
        %v485 = vld [vmem:[%s2 + $0x10] sm:$0xff]
        %v486 = vld [vmem:[%s2 + $0x18] sm:$0xff]
        %488 = vset.pattern.permute.xlu0 0
        %489 = vperm.xlu0 %488, %v483
        %v490 = vpop.permute.xlu0 %489
        %493 = vset.pattern.permute.xlu0 0
        %494 = vperm.xlu0 %493, %v484
        %v495 = vpop.permute.xlu0 %494
        %498 = vset.pattern.permute.xlu0 0
        %499 = vperm.xlu0 %498, %v485
        %v500 = vpop.permute.xlu0 %499
        %503 = vset.pattern.permute.xlu0 0
        %504 = vperm.xlu0 %503, %v486
        %v505 = vpop.permute.xlu0 %504
        %v511 = vunpack.c.l.b16 %v479
        %v512 = vunpack.c.l.b16 %v480
        %v513 = vunpack.c.l.b16 %v481
        %v514 = vunpack.c.l.b16 %v482
        %v515 = vpack.c.b16 %v512, %v511
        %v516 = vpack.c.b16 %v514, %v513
        %vm517 = vcmask 293888
        %v519 = vsel %vm517, %v515, 0
        %v522 = vsel %vm517, %v516, 0
        %v525 = vsel %vm444, %v442, 0
        %v528 = vsel %vm444, %v443, 0
        %530 = vmatprep.subr.bf16.mxu0 %v461
        %531 = vmatpush1.bf16.msra.mxu0 %v458
        %532 = vmatprep.subr.bf16.mxu0 %v477
        %533 = vmatpush1.bf16.msra.mxu0 %v474
        %534 = vmatprep.subr.bf16.mxu0 %v528
        %535 = vmatpush1.bf16.msra.mxu0 %v525
        %536 = vmatprep.subr.bf16.mxu0 0
        %537 = vmatpush1.bf16.msra.mxu0 0
        %538 = vmatprep.subr.bf16.mxu0 0
        %539 = vmatpush1.bf16.msra.mxu0 0
        %540 = vmatprep.subr.bf16.mxu0 0
        %541 = vmatpush1.bf16.msra.mxu0 0
        %542 = vmatprep.subr.bf16.mxu0 0
        %543 = vmatpush1.bf16.msra.mxu0 0
        %544 = vmatprep.subr.bf16.mxu0 0
        %545 = vmatpush1.bf16.msra.mxu0 0
        %546 = vmatprep.subr.bf16.mxu0 0
        %547 = vmatpush1.bf16.msra.mxu0 0
        %548 = vmatprep.subr.bf16.mxu0 0
        %549 = vmatpush1.bf16.msra.mxu0 0
        %550 = vmatprep.subr.bf16.mxu0 0
        %551 = vmatpush1.bf16.msra.mxu0 0
        %552 = vmatprep.subr.bf16.mxu0 0
        %553 = vmatpush1.bf16.msra.mxu0 0
        %554 = vmatprep.subr.bf16.mxu0 0
        %555 = vmatpush1.bf16.msra.mxu0 0
        %556 = vmatprep.subr.bf16.mxu0 0
        %557 = vmatpush1.bf16.msra.mxu0 0
        %558 = vmatprep.subr.bf16.mxu0 0
        %559 = vmatpush1.bf16.msra.mxu0 0
        %560 = vmatprep.subr.bf16.mxu0 0
        %561 = vmatpush1.bf16.msra.mxu0 0
        %562 = vmatprep.mubr.bf16.mxu0 0
        %563 = vmatmul.mubr.bf16.gmra.mrb[0].mxu0 %v519
        %v564 = vpop.f32.mrb[0].mxu0
        %v565 = vadd.f32 %v490, %v564
        %v566 = vpop.f32.mrb[0].mxu0
        %v567 = vadd.f32 %v490, %v566
        %v568 = vpop.f32.mrb[0].mxu0
        %v569 = vadd.f32 %v495, %v568
        %v570 = vpop.f32.mrb[0].mxu0
        %v571 = vadd.f32 %v495, %v570
        %572 = vmatprep.mubr.bf16.mxu0 0
        %573 = vmatmul.mubr.bf16.gmra.mrb[0].mxu0 %v522
        %v574 = vpop.f32.mrb[0].mxu0
        %v575 = vadd.f32 %v500, %v574
        %v576 = vpop.f32.mrb[0].mxu0
        %v577 = vadd.f32 %v500, %v576
        %v578 = vpop.f32.mrb[0].mxu0
        %v579 = vadd.f32 %v505, %v578
        %v580 = vpop.f32.mrb[0].mxu0
        %v581 = vadd.f32 %v505, %v580
        %582 = vdwg.mxu0
        %v583 = vld [vmem:[%s3] sm:$0xff]
        %v584 = vld [vmem:[%s3 + $0x8] sm:$0xff]
        %v585 = vld [vmem:[%s3 + $0x10] sm:$0xff]
        %v586 = vld [vmem:[%s3 + $0x18] sm:$0xff]
        %v587 = vadd.f32 %v565, %v567
        %588 = vadd.xlane.f32.xlu0 %v587
        %v589 = vpop.xlane.xlu0 %588
        %v590 = vadd.f32 %v569, %v571
        %591 = vadd.xlane.f32.xlu0 %v590
        %v592 = vpop.xlane.xlu0 %591
        %v593 = vadd.f32 %v575, %v577
        %594 = vadd.xlane.f32.xlu0 %v593
        %v595 = vpop.xlane.xlu0 %594
        %v596 = vadd.f32 %v579, %v581
        %597 = vadd.xlane.f32.xlu0 %v596
        %v598 = vpop.xlane.xlu0 %597
        %vm599 = vcmask 261120
        %v601 = vsel %vm599, %v583, 0
        %v604 = vsel %vm599, %v584, 0
        %v607 = vsel %vm599, %v585, 0
        %v610 = vsel %vm599, %v586, 0
        %612 = vmatprep.subr.mxu0 0.0
        %613 = vmatpush1.msra.mxu0 %v589
        %614 = vmatprep.subr.mxu0 0.0
        %615 = vmatpush1.msra.mxu0 %v592
        %616 = vmatprep.subr.mxu0 0.0
        %617 = vmatpush1.msra.mxu0 %v595
        %618 = vmatprep.subr.mxu0 0.0
        %619 = vmatpush1.msra.mxu0 %v598
        %620 = vmatprep.subr.mxu0 0.0
        %621 = vmatpush1.msra.mxu0 0.0
        %622 = vmatprep.subr.mxu0 0.0
        %623 = vmatpush1.msra.mxu0 0.0
        %624 = vmatprep.subr.mxu0 0.0
        %625 = vmatpush1.msra.mxu0 0.0
        %626 = vmatprep.subr.mxu0 0.0
        %627 = vmatpush1.msra.mxu0 0.0
        %628 = vmatprep.subr.mxu0 0.0
        %629 = vmatpush1.msra.mxu0 0.0
        %630 = vmatprep.subr.mxu0 0.0
        %631 = vmatpush1.msra.mxu0 0.0
        %632 = vmatprep.subr.mxu0 0.0
        %633 = vmatpush1.msra.mxu0 0.0
        %634 = vmatprep.subr.mxu0 0.0
        %635 = vmatpush1.msra.mxu0 0.0
        %636 = vmatprep.subr.mxu0 0.0
        %637 = vmatpush1.msra.mxu0 0.0
        %638 = vmatprep.subr.mxu0 0.0
        %639 = vmatpush1.msra.mxu0 0.0
        %640 = vmatprep.subr.mxu0 0.0
        %641 = vmatpush1.msra.mxu0 0.0
        %642 = vmatprep.subr.mxu0 0.0
        %643 = vmatpush1.msra.mxu0 0.0
        %644 = vmatprep.subr.mxu0 0.0
        %645 = vmatpush1.msra.mxu0 0.0
        %646 = vmatprep.subr.mxu0 0.0
        %647 = vmatpush1.msra.mxu0 0.0
        %648 = vmatprep.subr.mxu0 0.0
        %649 = vmatpush1.msra.mxu0 0.0
        %650 = vmatprep.subr.mxu0 0.0
        %651 = vmatpush1.msra.mxu0 0.0
        %652 = vmatprep.subr.mxu0 0.0
        %653 = vmatpush1.msra.mxu0 0.0
        %654 = vmatprep.subr.mxu0 0.0
        %655 = vmatpush1.msra.mxu0 0.0
        %656 = vmatprep.subr.mxu0 0.0
        %657 = vmatpush1.msra.mxu0 0.0
        %658 = vmatprep.subr.mxu0 0.0
        %659 = vmatpush1.msra.mxu0 0.0
        %660 = vmatprep.subr.mxu0 0.0
        %661 = vmatpush1.msra.mxu0 0.0
        %662 = vmatprep.subr.mxu0 0.0
        %663 = vmatpush1.msra.mxu0 0.0
        %664 = vmatprep.subr.mxu0 0.0
        %665 = vmatpush1.msra.mxu0 0.0
        %666 = vmatprep.subr.mxu0 0.0
        %667 = vmatpush1.msra.mxu0 0.0
        %668 = vmatprep.subr.mxu0 0.0
        %669 = vmatpush1.msra.mxu0 0.0
        %670 = vmatprep.subr.mxu0 0.0
        %671 = vmatpush1.msra.mxu0 0.0
        %672 = vmatprep.subr.mxu0 0.0
        %673 = vmatpush1.msra.mxu0 0.0
        %674 = vmatprep.subr.mxu0 0.0
        %675 = vmatpush1.msra.mxu0 0.0
        %676 = vmatprep.mubr.f32.mxu0 0.0
        %677 = vmatmul.mubr.f32.gmra.mrb[0].mxu0 %v601
        %v678 = vpop.f32.mrb[0].mxu0
        %v679 = vadd.f32 0.0, %v678
        %v680 = vpop.f32.mrb[0].mxu0
        %681 = vmatprep.mubr.f32.mxu0 0.0
        %682 = vmatmul.mubr.f32.gmra.mrb[0].mxu0 %v604
        %v683 = vpop.f32.mrb[0].mxu0
        %v684 = vadd.f32 0.0, %v683
        %v685 = vpop.f32.mrb[0].mxu0
        %686 = vmatprep.mubr.f32.mxu0 0.0
        %687 = vmatmul.mubr.f32.gmra.mrb[0].mxu0 %v607
        %v688 = vpop.f32.mrb[0].mxu0
        %v689 = vadd.f32 0.0, %v688
        %v690 = vpop.f32.mrb[0].mxu0
        %691 = vmatprep.mubr.f32.mxu0 0.0
        %692 = vmatmul.mubr.f32.gmra.mrb[0].mxu0 %v610
        %v693 = vpop.f32.mrb[0].mxu0
        %v694 = vadd.f32 0.0, %v693
        %v695 = vpop.f32.mrb[0].mxu0
        %696 = vdwg.mxu0
        %v697 = vmul.f32 %v679, 0.0009765625
        %v698 = vmul.f32 %v684, 0.0009765625
        %v699 = vmul.f32 %v689, 0.0009765625
        %v700 = vmul.f32 %v694, 0.0009765625
        %702 = vset.pattern.permute.xlu0 0
        %703 = vperm.xlu0 %702, %v697
        %v704 = vpop.permute.xlu0 %703
        %707 = vset.pattern.permute.xlu0 0
        %708 = vperm.xlu0 %707, %v698
        %v709 = vpop.permute.xlu0 %708
        %712 = vset.pattern.permute.xlu0 0
        %713 = vperm.xlu0 %712, %v699
        %v714 = vpop.permute.xlu0 %713
        %717 = vset.pattern.permute.xlu0 0
        %718 = vperm.xlu0 %717, %v700
        %v719 = vpop.permute.xlu0 %718
        %v721 = vsub.f32 %v565, %v704
        %v722 = vsub.f32 %v567, %v704
        %v723 = vsub.f32 %v569, %v709
        %v724 = vsub.f32 %v571, %v709
        %v725 = vsub.f32 %v575, %v714
        %v726 = vsub.f32 %v577, %v714
        %v727 = vsub.f32 %v579, %v719
        %v728 = vsub.f32 %v581, %v719
        %v729 = vmul.f32 %v721, %v721
        %v730 = vmul.f32 %v722, %v722
        %v731 = vmul.f32 %v723, %v723
        %v732 = vmul.f32 %v724, %v724
        %v733 = vmul.f32 %v725, %v725
        %v734 = vmul.f32 %v726, %v726
        %v735 = vmul.f32 %v727, %v727
        %v736 = vmul.f32 %v728, %v728
        %v737 = vadd.f32 %v729, %v730
        %738 = vadd.xlane.f32.xlu0 %v737
        %v739 = vpop.xlane.xlu0 %738
        %v740 = vadd.f32 %v731, %v732
        %741 = vadd.xlane.f32.xlu0 %v740
        %v742 = vpop.xlane.xlu0 %741
        %v743 = vadd.f32 %v733, %v734
        %744 = vadd.xlane.f32.xlu0 %v743
        %v745 = vpop.xlane.xlu0 %744
        %v746 = vadd.f32 %v735, %v736
        %747 = vadd.xlane.f32.xlu0 %v746
        %v748 = vpop.xlane.xlu0 %747
        %749 = vmatprep.subr.mxu0 0.0
        %750 = vmatpush1.msra.mxu0 %v739
        %751 = vmatprep.subr.mxu0 0.0
        %752 = vmatpush1.msra.mxu0 %v742
        %753 = vmatprep.subr.mxu0 0.0
        %754 = vmatpush1.msra.mxu0 %v745
        %755 = vmatprep.subr.mxu0 0.0
        %756 = vmatpush1.msra.mxu0 %v748
        %757 = vmatprep.subr.mxu0 0.0
        %758 = vmatpush1.msra.mxu0 0.0
        %759 = vmatprep.subr.mxu0 0.0
        %760 = vmatpush1.msra.mxu0 0.0
        %761 = vmatprep.subr.mxu0 0.0
        %762 = vmatpush1.msra.mxu0 0.0
        %763 = vmatprep.subr.mxu0 0.0
        %764 = vmatpush1.msra.mxu0 0.0
        %765 = vmatprep.subr.mxu0 0.0
        %766 = vmatpush1.msra.mxu0 0.0
        %767 = vmatprep.subr.mxu0 0.0
        %768 = vmatpush1.msra.mxu0 0.0
        %769 = vmatprep.subr.mxu0 0.0
        %770 = vmatpush1.msra.mxu0 0.0
        %771 = vmatprep.subr.mxu0 0.0
        %772 = vmatpush1.msra.mxu0 0.0
        %773 = vmatprep.subr.mxu0 0.0
        %774 = vmatpush1.msra.mxu0 0.0
        %775 = vmatprep.subr.mxu0 0.0
        %776 = vmatpush1.msra.mxu0 0.0
        %777 = vmatprep.subr.mxu0 0.0
        %778 = vmatpush1.msra.mxu0 0.0
        %779 = vmatprep.subr.mxu0 0.0
        %780 = vmatpush1.msra.mxu0 0.0
        %781 = vmatprep.subr.mxu0 0.0
        %782 = vmatpush1.msra.mxu0 0.0
        %783 = vmatprep.subr.mxu0 0.0
        %784 = vmatpush1.msra.mxu0 0.0
        %785 = vmatprep.subr.mxu0 0.0
        %786 = vmatpush1.msra.mxu0 0.0
        %787 = vmatprep.subr.mxu0 0.0
        %788 = vmatpush1.msra.mxu0 0.0
        %789 = vmatprep.subr.mxu0 0.0
        %790 = vmatpush1.msra.mxu0 0.0
        %791 = vmatprep.subr.mxu0 0.0
        %792 = vmatpush1.msra.mxu0 0.0
        %793 = vmatprep.subr.mxu0 0.0
        %794 = vmatpush1.msra.mxu0 0.0
        %795 = vmatprep.subr.mxu0 0.0
        %796 = vmatpush1.msra.mxu0 0.0
        %797 = vmatprep.subr.mxu0 0.0
        %798 = vmatpush1.msra.mxu0 0.0
        %799 = vmatprep.subr.mxu0 0.0
        %800 = vmatpush1.msra.mxu0 0.0
        %801 = vmatprep.subr.mxu0 0.0
        %802 = vmatpush1.msra.mxu0 0.0
        %803 = vmatprep.subr.mxu0 0.0
        %804 = vmatpush1.msra.mxu0 0.0
        %805 = vmatprep.subr.mxu0 0.0
        %806 = vmatpush1.msra.mxu0 0.0
        %807 = vmatprep.subr.mxu0 0.0
        %808 = vmatpush1.msra.mxu0 0.0
        %809 = vmatprep.subr.mxu0 0.0
        %810 = vmatpush1.msra.mxu0 0.0
        %811 = vmatprep.subr.mxu0 0.0
        %812 = vmatpush1.msra.mxu0 0.0
        %813 = vmatprep.mubr.f32.mxu0 0.0
        %814 = vmatmul.mubr.f32.gmra.mrb[0].mxu0 %v601
        %v815 = vpop.f32.mrb[0].mxu0
        %v816 = vadd.f32 0.0, %v815
        %v817 = vpop.f32.mrb[0].mxu0
        %818 = vmatprep.mubr.f32.mxu0 0.0
        %819 = vmatmul.mubr.f32.gmra.mrb[0].mxu0 %v604
        %v820 = vpop.f32.mrb[0].mxu0
        %v821 = vadd.f32 0.0, %v820
        %v822 = vpop.f32.mrb[0].mxu0
        %823 = vmatprep.mubr.f32.mxu0 0.0
        %824 = vmatmul.mubr.f32.gmra.mrb[0].mxu0 %v607
        %v825 = vpop.f32.mrb[0].mxu0
        %v826 = vadd.f32 0.0, %v825
        %v827 = vpop.f32.mrb[0].mxu0
        %828 = vmatprep.mubr.f32.mxu0 0.0
        %829 = vmatmul.mubr.f32.gmra.mrb[0].mxu0 %v610
        %v830 = vpop.f32.mrb[0].mxu0
        %v831 = vadd.f32 0.0, %v830
        %v832 = vpop.f32.mrb[0].mxu0
        %833 = vdwg.mxu0
        %v834 = vmul.f32 %v816, 0.0009765625
        %v835 = vmul.f32 %v821, 0.0009765625
        %v836 = vmul.f32 %v826, 0.0009765625
        %v837 = vmul.f32 %v831, 0.0009765625
        %v838 = vadd.f32 %v834, 1e-05
        %v839 = vadd.f32 %v835, 1e-05
        %v840 = vadd.f32 %v836, 1e-05
        %v841 = vadd.f32 %v837, 1e-05
        %v842 = vrsqrt.pop %v838
        %v843 = vrsqrt.pop %v839
        %v844 = vrsqrt.pop %v840
        %v845 = vrsqrt.pop %v841
        %847 = vset.pattern.permute.xlu0 0
        %848 = vperm.xlu0 %847, %v842
        %v849 = vpop.permute.xlu0 %848
        %852 = vset.pattern.permute.xlu0 0
        %853 = vperm.xlu0 %852, %v843
        %v854 = vpop.permute.xlu0 %853
        %857 = vset.pattern.permute.xlu0 0
        %858 = vperm.xlu0 %857, %v844
        %v859 = vpop.permute.xlu0 %858
        %862 = vset.pattern.permute.xlu0 0
        %863 = vperm.xlu0 %862, %v845
        %v864 = vpop.permute.xlu0 %863
        %v866 = vmul.f32 %v721, %v849
        %v867 = vmul.f32 %v722, %v849
        %v868 = vmul.f32 %v723, %v854
        %v869 = vmul.f32 %v724, %v854
        %v870 = vmul.f32 %v725, %v859
        %v871 = vmul.f32 %v726, %v859
        %v872 = vmul.f32 %v727, %v864
        %v873 = vmul.f32 %v728, %v864
        %s874 = scalar_lea.vmem %s2, 32
        %v875 = vld [vmem:[%s874] sm:$0xff]
        %v876 = vld [vmem:[%s874 + $0x8] sm:$0xff]
        %v877 = vld [vmem:[%s874 + $0x10] sm:$0xff]
        %v878 = vld [vmem:[%s874 + $0x18] sm:$0xff]
        %880 = vset.pattern.permute.xlu0 0
        %881 = vperm.xlu0 %880, %v875
        %v882 = vpop.permute.xlu0 %881
        %885 = vset.pattern.permute.xlu0 0
        %886 = vperm.xlu0 %885, %v876
        %v887 = vpop.permute.xlu0 %886
        %890 = vset.pattern.permute.xlu0 0
        %891 = vperm.xlu0 %890, %v877
        %v892 = vpop.permute.xlu0 %891
        %895 = vset.pattern.permute.xlu0 0
        %896 = vperm.xlu0 %895, %v878
        %v897 = vpop.permute.xlu0 %896
        %v899 = vmul.f32 %v866, %v882
        %v900 = vmul.f32 %v867, %v882
        %v901 = vmul.f32 %v868, %v887
        %v902 = vmul.f32 %v869, %v887
        %v903 = vmul.f32 %v870, %v892
        %v904 = vmul.f32 %v871, %v892
        %v905 = vmul.f32 %v872, %v897
        %v906 = vmul.f32 %v873, %v897
        %s907 = scalar_lea.vmem %s2, 64
        %v908 = vld [vmem:[%s907] sm:$0xff]
        %v909 = vld [vmem:[%s907 + $0x8] sm:$0xff]
        %v910 = vld [vmem:[%s907 + $0x10] sm:$0xff]
        %v911 = vld [vmem:[%s907 + $0x18] sm:$0xff]
        %913 = vset.pattern.permute.xlu0 0
        %914 = vperm.xlu0 %913, %v908
        %v915 = vpop.permute.xlu0 %914
        %918 = vset.pattern.permute.xlu0 0
        %919 = vperm.xlu0 %918, %v909
        %v920 = vpop.permute.xlu0 %919
        %923 = vset.pattern.permute.xlu0 0
        %924 = vperm.xlu0 %923, %v910
        %v925 = vpop.permute.xlu0 %924
        %928 = vset.pattern.permute.xlu0 0
        %929 = vperm.xlu0 %928, %v911
        %v930 = vpop.permute.xlu0 %929
        %v932 = vadd.f32 %v899, %v915
        %v933 = vadd.f32 %v900, %v915
        %v934 = vadd.f32 %v901, %v920
        %v935 = vadd.f32 %v902, %v920
        %v936 = vadd.f32 %v903, %v925
        %v937 = vadd.f32 %v904, %v925
        %v938 = vadd.f32 %v905, %v930
        %v939 = vadd.f32 %v906, %v930
        %v940 = vxor.u32 %v932, 2147483648
        %v941 = vxor.u32 %v933, 2147483648
        %v942 = vxor.u32 %v934, 2147483648
        %v943 = vxor.u32 %v935, 2147483648
        %v944 = vxor.u32 %v936, 2147483648
        %v945 = vxor.u32 %v937, 2147483648
        %v946 = vxor.u32 %v938, 2147483648
        %v947 = vxor.u32 %v939, 2147483648
        %v948 = vmul.f32 %v940, 1.442695
        %v949 = vpow.pop %v948
        %v950 = vmul.f32 %v941, 1.442695
        %v951 = vpow.pop %v950
        %v952 = vmul.f32 %v942, 1.442695
        %v953 = vpow.pop %v952
        %v954 = vmul.f32 %v943, 1.442695
        %v955 = vpow.pop %v954
        %v956 = vmul.f32 %v944, 1.442695
        %v957 = vpow.pop %v956
        %v958 = vmul.f32 %v945, 1.442695
        %v959 = vpow.pop %v958
        %v960 = vmul.f32 %v946, 1.442695
        %v961 = vpow.pop %v960
        %v962 = vmul.f32 %v947, 1.442695
        %v963 = vpow.pop %v962
        %v964 = vadd.f32 %v949, 1.0
        %v965 = vadd.f32 %v951, 1.0
        %v966 = vadd.f32 %v953, 1.0
        %v967 = vadd.f32 %v955, 1.0
        %v968 = vadd.f32 %v957, 1.0
        %v969 = vadd.f32 %v959, 1.0
        %v970 = vadd.f32 %v961, 1.0
        %v971 = vadd.f32 %v963, 1.0
        %v972 = vrcp.pop %v964
        %v973 = vmul.f32 1.0, %v972
        %v974 = vrcp.pop %v965
        %v975 = vmul.f32 1.0, %v974
        %v976 = vrcp.pop %v966
        %v977 = vmul.f32 1.0, %v976
        %v978 = vrcp.pop %v967
        %v979 = vmul.f32 1.0, %v978
        %v980 = vrcp.pop %v968
        %v981 = vmul.f32 1.0, %v980
        %v982 = vrcp.pop %v969
        %v983 = vmul.f32 1.0, %v982
        %v984 = vrcp.pop %v970
        %v985 = vmul.f32 1.0, %v984
        %v986 = vrcp.pop %v971
        %v987 = vmul.f32 1.0, %v986
        %v988 = vmul.f32 %v932, %v973
        %v989 = vmul.f32 %v933, %v975
        %v990 = vmul.f32 %v934, %v977
        %v991 = vmul.f32 %v935, %v979
        %v992 = vmul.f32 %v936, %v981
        %v993 = vmul.f32 %v937, %v983
        %v994 = vmul.f32 %v938, %v985
        %v995 = vmul.f32 %v939, %v987
        %996 = vst [vmem:[%s190] sm:$0xff] %v988
        %997 = vst [vmem:[%s190 + $0x8] sm:$0xff] %v989
        %998 = vst [vmem:[%s190 + $0x10] sm:$0xff] %v990
        %999 = vst [vmem:[%s190 + $0x18] sm:$0xff] %v991
        %1000 = vst [vmem:[%s190 + $0x20] sm:$0xff] %v992
        %1001 = vst [vmem:[%s190 + $0x28] sm:$0xff] %v993
        %1002 = vst [vmem:[%s190 + $0x30] sm:$0xff] %v994
        %1003 = vst [vmem:[%s190 + $0x38] sm:$0xff] %v995
        %s1004 = sand.u32 %s115, 1
        %s1005 = scalar_lea.sflag [#allocation3], %s1004
        %s1006 = sand.u32 %s115, 1
        %s1007 = smul.addr %s1006, 64
        %s1008 = scalar_lea.vmem [#allocation2], %s1007
        // Predicated region
        $region37: #{tpu_custom_call.1} parent=35 // pred_check
          %p1009 = pneg %p125
        $region38: #{tpu_custom_call.1} parent=35 // pred_check_branch
          %1011 = sbr.rel (%p1009) target = $region40
        $region39: #{tpu_custom_call.1} parent=35 // pred_region
          %s1013 = ssub.s32 1024, 1024
          %1014 = vsyncadd %s1005, %s1013
          %s1015 = smul.addr %s18, 8
          %s1016 = smul.addr %s1015, 128
          %s1017 = scalar_lea.hbm %s4, %s1016
          %s1018 = sshll.u32 %s1008, 4
          %s1019 = int_to_ptr.vmem [resolvable:$true] %s1018
          %1024 = dma.vmem_to_hbm [thread:$0]  %s1019, 1024, %s1017, %s1005, 256, 256, 16
        $region40: #{tpu_custom_call.1} parent=35 // pred_fallthru
          _
      $region36: #{tpu_custom_call.1} parent=5 // pred_fallthru
        _
      %p1025 = scmp.le.s32.totalorder 2, %s13
      // Predicated region
      $region41: #{tpu_custom_call.1} parent=5 // pred_check
        %p1026 = pneg %p1025
      $region42: #{tpu_custom_call.1} parent=5 // pred_check_branch
        %1028 = sbr.rel (%p1026) target = $region44
      $region43: #{tpu_custom_call.1} parent=5 // pred_region
        %s1029 = ssub.s32 %s13, 2
        // Predicated region
        $region45: #{tpu_custom_call.1} parent=43 // pred_check
          %p1030 = pneg %p131
        $region46: #{tpu_custom_call.1} parent=43 // pred_check_branch
          %1032 = sbr.rel (%p1030) target = $region48
        $region47: #{tpu_custom_call.1} parent=43 // pred_region
          %s1033 = sand.u32 %s116, 1
          %s1034 = scalar_lea.sflag [#allocation3], %s1033
          %s1035 = sand.u32 %s116, 1
          %s1036 = smul.addr %s1035, 64
          %s1037 = scalar_lea.vmem [#allocation2], %s1036
          %1038 = dma.done %s1034, 1024
        $region48: #{tpu_custom_call.1} parent=43 // pred_fallthru
          _
      $region44: #{tpu_custom_call.1} parent=5 // pred_fallthru
        _
    $region6: #{tpu_custom_call.1} parent=1 // loop_footer
      %s17 = sadd.s32 1, %s13
    $region7: #{tpu_custom_call.1} parent=1 // loop_footer_branch
      %12 = sbr.rel target = $region3
    $region8: #{tpu_custom_call.1} parent=1 // loop_exit
      _
    %1039 = vsyncpa [#allocation3], 1
    %s1040 = scalar_lea.sflag [#allocation3], 1
    %1041 = vsyncpa %s1040, 1

</llo_original>
